<compile_context>
chip_gen: v7x
topology: tpu7x:2x2x1
jax: 0.10.0
libtpu: 0.0.40
codegen_flags: <defaults>
</compile_context>

<pallas_src>
import math
import functools

import jax
import jax.numpy as jnp
from jax.experimental import pallas as pl
from jax.experimental.pallas import tpu as pltpu


_CLAMP = 50000.0
_INV_SQRT2 = 1.0 / math.sqrt(2.0)


def _bert_intermediate_kernel(x_ref, w_ref, b_ref, o_ref):
    # x_ref: (bm, H)  w_ref: (H, bn)  b_ref: (1, bn)  o_ref: (bm, bn)
    h = jnp.dot(x_ref[...], w_ref[...], preferred_element_type=jnp.float32)
    h = h + b_ref[...].astype(jnp.float32)
    # clamp_values(h, -50000, 50000)
    h = jnp.clip(h, -_CLAMP, _CLAMP)
    # exact (erf-based) GELU, matching torch.nn.functional.gelu / ACT2FN["gelu"]
    h = 0.5 * h * (1.0 + jax.lax.erf(h * _INV_SQRT2))
    # NOTE: the module's second clamp_values is a mathematical no-op once the
    # pre-activation is clamped (GELU(x) <= x for x > 0, GELU(x) >= -0.17 for
    # x < 0), so it is dropped to save VPU work — numerically identical.
    o_ref[...] = h.astype(o_ref.dtype)


def _round_up(x, m):
    return ((x + m - 1) // m) * m


def _pick_block_n(intermediate, max_bn=512):
    """Lane-dense N tile: full I if small, else a 128-multiple divisor <= 512."""
    if intermediate <= max_bn:
        return intermediate
    for bn in (512, 384, 256, 128):
        if intermediate % bn == 0:
            return bn
    return intermediate  # fall back to full width (still lane-dense)


@functools.partial(
    jax.jit, static_argnames=("block_m", "block_n", "use_bf16_matmul")
)
def bert_intermediate(hidden_states, weight, bias, *, block_m=256, block_n=None,
                      use_bf16_matmul=False):
    """BertIntermediate forward: GELU(clamp(x @ W + b)).

    hidden_states: (B, S, H); weight: (H, I); bias: (I,).
    Returns (B, S, I) in hidden_states.dtype.
    """
    B, S, H = hidden_states.shape
    I = weight.shape[1]
    out_dtype = hidden_states.dtype
    tokens = B * S

    # --- token (M) tiling: large tiles, pad the ragged tail instead of assert.
    bm = min(block_m, _round_up(tokens, 8))
    padded_tokens = _round_up(tokens, bm)

    x2d = hidden_states.reshape(tokens, H)
    if padded_tokens != tokens:
        x2d = jnp.pad(x2d, ((0, padded_tokens - tokens), (0, 0)))

    # --- intermediate (N) tiling: only an (H, bn) weight slab resident.
    bn = block_n if block_n is not None else _pick_block_n(I)
    assert I % bn == 0, "intermediate_size must be divisible by block_n"

    b2d = bias.reshape(1, I)

    # Optional bf16 matmul inputs (f32 MXU accumulation): halves weight HBM
    # traffic / VMEM and doubles MXU throughput on v5e/v6e/v7x.
    if use_bf16_matmul:
        x2d = x2d.astype(jnp.bfloat16)
        w = weight.astype(jnp.bfloat16)
    else:
        w = weight

    grid = (padded_tokens // bm, I // bn)

    bytes_accessed = (
        x2d.size * x2d.dtype.itemsize
        + w.size * w.dtype.itemsize
        + b2d.size * b2d.dtype.itemsize
        + padded_tokens * I * jnp.dtype(out_dtype).itemsize
    )
    cost = pl.CostEstimate(
        flops=2 * padded_tokens * H * I,
        transcendentals=padded_tokens * I,  # erf
        bytes_accessed=bytes_accessed,
    )

    # Explicit VMEM budget: double-buffered x / weight-slab / bias / out tiles
    # plus margin, clamped to stay within v7x's 64 MiB physical VMEM.
    tile_bytes = 2 * (
        bm * H * x2d.dtype.itemsize
        + H * bn * w.dtype.itemsize
        + bn * b2d.dtype.itemsize
        + bm * bn * jnp.dtype(out_dtype).itemsize
    )
    vmem_limit = int(min(64 * 1024 * 1024, max(2 * tile_bytes + (4 << 20), 16 << 20)))

    out2d = pl.pallas_call(
        _bert_intermediate_kernel,
        out_shape=jax.ShapeDtypeStruct((padded_tokens, I), out_dtype),
        grid_spec=pltpu.PrefetchScalarGridSpec(
            num_scalar_prefetch=0,
            grid=grid,
            in_specs=[
                pl.BlockSpec((bm, H), lambda i, j: (i, 0)),   # activation tile
                pl.BlockSpec((H, bn), lambda i, j: (0, j)),   # weight slab
                pl.BlockSpec((1, bn), lambda i, j: (0, j)),   # bias slab
            ],
            out_specs=pl.BlockSpec((bm, bn), lambda i, j: (i, j)),
        ),
        compiler_params=pltpu.CompilerParams(
            dimension_semantics=("parallel", "parallel"),
            vmem_limit_bytes=vmem_limit,
        ),
        cost_estimate=cost,
    )(x2d, w, b2d)

    return out2d[:tokens].reshape(B, S, I)


def _reference(hidden_states, weight, bias):
    h = hidden_states.astype(jnp.float32) @ weight.astype(jnp.float32) + bias
    h = jnp.clip(h, -_CLAMP, _CLAMP)
    h = 0.5 * h * (1.0 + jax.lax.erf(h / jnp.sqrt(2.0)))
    h = jnp.clip(h, -_CLAMP, _CLAMP)
    return h.astype(hidden_states.dtype)


if __name__ == "__main__":
    # Small, BERT-like config: hidden_size=32, intermediate_size=128.
    batch, seq, hidden_size, intermediate_size = 2, 8, 32, 128

    key = jax.random.PRNGKey(0)
    k_x, k_w, k_b = jax.random.split(key, 3)

    hidden_states = jax.random.normal(k_x, (batch, seq, hidden_size), dtype=jnp.float32)
    # Deterministic synthetic "Linear" params (no checkpoint load).
    weight = jax.random.normal(k_w, (hidden_size, intermediate_size), dtype=jnp.float32) * 0.02
    bias = jax.random.normal(k_b, (intermediate_size,), dtype=jnp.float32) * 0.02

    ref = _reference(hidden_states, weight, bias)

    # Exact (f32 matmul) path — matches torch's f32 Linear + erf GELU.
    out = bert_intermediate(hidden_states, weight, bias)
    out = jax.block_until_ready(out)
    assert out.shape == (batch, seq, intermediate_size)
    assert jnp.allclose(out, ref, atol=1e-5, rtol=1e-5), "f32 path mismatch vs reference"

    # bf16-matmul fast path (f32 accumulation) — looser tolerance.
    out_bf16 = bert_intermediate(hidden_states, weight, bias, use_bf16_matmul=True)
    out_bf16 = jax.block_until_ready(out_bf16)
    assert jnp.allclose(out_bf16, ref, atol=3e-2, rtol=3e-2), "bf16 path mismatch vs reference"

    print("KERNEL_OK")
</pallas_src>

<mosaic_0001>
module attributes {stable_mosaic.version = 11 : i64} {
  func.func @_bert_intermediate_kernel(%arg0: i32, %arg1: i32, %arg2: memref<16x32xf32, #tpu.memory_space<vmem>>, %arg3: memref<32x128xf32, #tpu.memory_space<vmem>>, %arg4: memref<1x128xf32, #tpu.memory_space<vmem>>, %arg5: memref<16x128xf32, #tpu.memory_space<vmem>>) attributes {dimension_semantics = [#tpu.dimension_semantics<parallel>, #tpu.dimension_semantics<parallel>], iteration_bounds = array<i64: 1, 1>, scalar_prefetch = 0 : i64, scratch_operands = 0 : i64, tpu.core_type = #tpu.core_type<tc>, window_params = [{transform_indices = @transform_0, window_bounds = array<i64: 16, 32>}, {transform_indices = @transform_1, window_bounds = array<i64: 32, 128>}, {transform_indices = @transform_2, window_bounds = array<i64: 1, 128>}, {transform_indices = @transform_3, window_bounds = array<i64: 16, 128>}]} {
    %c0 = arith.constant 0 : index
    %c0_0 = arith.constant 0 : index
    %0 = vector.load %arg2[%c0, %c0_0] : memref<16x32xf32, #tpu.memory_space<vmem>>, vector<16x32xf32>
    %c0_1 = arith.constant 0 : index
    %c0_2 = arith.constant 0 : index
    %1 = vector.load %arg3[%c0_1, %c0_2] : memref<32x128xf32, #tpu.memory_space<vmem>>, vector<32x128xf32>
    %cst = arith.constant dense<0.000000e+00> : vector<16x128xf32>
    %2 = tpu.matmul %0, %1, %cst {dimension_numbers = #tpu.dot_dimension_numbers<[1], [0], [0], [1], [0, 0, 1, 1], [], []>} : vector<16x32xf32>, vector<32x128xf32>, vector<16x128xf32> -> vector<16x128xf32>
    %c0_3 = arith.constant 0 : index
    %c0_4 = arith.constant 0 : index
    %3 = vector.load %arg4[%c0_3, %c0_4] : memref<1x128xf32, #tpu.memory_space<vmem>>, vector<1x128xf32>
    %4 = vector.broadcast %3 : vector<1x128xf32> to vector<16x128xf32>
    %5 = arith.addf %2, %4 : vector<16x128xf32>
    %cst_5 = arith.constant -5.000000e+04 : f32
    %cst_6 = arith.constant 5.000000e+04 : f32
    %6 = vector.broadcast %cst_5 : f32 to vector<16x128xf32>
    %7 = arith.maximumf %6, %5 : vector<16x128xf32>
    %8 = vector.broadcast %cst_6 : f32 to vector<16x128xf32>
    %9 = arith.minimumf %8, %7 : vector<16x128xf32>
    %cst_7 = arith.constant 5.000000e-01 : f32
    %10 = vector.broadcast %cst_7 : f32 to vector<16x128xf32>
    %11 = arith.mulf %10, %9 : vector<16x128xf32>
    %cst_8 = arith.constant 0.707106769 : f32
    %12 = vector.broadcast %cst_8 : f32 to vector<16x128xf32>
    %13 = arith.mulf %9, %12 : vector<16x128xf32>
    %14 = math.erf %13 : vector<16x128xf32>
    %cst_9 = arith.constant 1.000000e+00 : f32
    %15 = vector.broadcast %cst_9 : f32 to vector<16x128xf32>
    %16 = arith.addf %15, %14 : vector<16x128xf32>
    %17 = arith.mulf %11, %16 : vector<16x128xf32>
    %c0_10 = arith.constant 0 : index
    %c0_11 = arith.constant 0 : index
    %18 = vector.load %arg5[%c0_10, %c0_11] : memref<16x128xf32, #tpu.memory_space<vmem>>, vector<16x128xf32>
    tpu.vector_store %arg5[%c0_10, %c0_11], %17 {strides = array<i32>} : memref<16x128xf32, #tpu.memory_space<vmem>>, vector<16x128xf32>,
    return
  }
  func.func @transform_0(%arg0: i32, %arg1: i32) -> (i32, i32) {
    %c0_i32 = arith.constant 0 : i32
    %c0_i32_0 = arith.constant 0 : i32
    return %arg0, %c0_i32 : i32, i32
  }
  func.func @transform_1(%arg0: i32, %arg1: i32) -> (i32, i32) {
    %c0_i32 = arith.constant 0 : i32
    %c0_i32_0 = arith.constant 0 : i32
    return %c0_i32, %arg1 : i32, i32
  }
  func.func @transform_2(%arg0: i32, %arg1: i32) -> (i32, i32) {
    %c0_i32 = arith.constant 0 : i32
    %c0_i32_0 = arith.constant 0 : i32
    return %c0_i32, %arg1 : i32, i32
  }
  func.func @transform_3(%arg0: i32, %arg1: i32) -> (i32, i32) {
    %c0_i32 = arith.constant 0 : i32
    return %arg0, %arg1 : i32, i32
  }
}

</mosaic_0001>

<llo_original>
// kernel: bert_intermediate.1
$region0: #{bert_intermediate.1}
  #allocation0 [shape = 'u32[]', space=smem, size = 0x4, offset = 0x4, fixed_abs, tag = 'smem constant byte address 0x4 - core index']
  #allocation1 [shape = 'u32[144,128]{1,0:T(1,128)}', space=vmem, size = 0x12000, scoped, tag = 'internal scratch']
  %s0 = inlined_call_operand.hbm [shape: f32[16,32], index: 0, kind: input, shape index: {}]
  %s1 = inlined_call_operand.hbm [shape: f32[32,128], index: 1, kind: input, shape index: {}]
  %s2 = inlined_call_operand.vmem [shape: f32[1,128], index: 2, kind: input, shape index: {}]
  %s3 = inlined_call_operand.hbm [shape: f32[16,128], index: 3, kind: output, shape index: {}]
  %s4 = sld [smem:[#allocation0]]
  $region30: #{bert_intermediate.1} parent=0
    _
  %s6 = ssub.s32 1, %s4
  %s7 = scalar_select 0, %s6, %s4
  $region1: #{bert_intermediate.1} parent=0
    #allocation2 [shape = 'u8[8192]{0}', space=vmem, size = 0x2000, scoped, tag = 'input window, operand 0, single buffered']
    #allocation3 [shape = 's32[1]{0}', space=sflag, size = 0x4, scoped, tag = 'scoped memory for bert_intermediate.1']
    #allocation4 [shape = 's32[1]{0}', space=sflag, size = 0x4, scoped, tag = 'scoped memory for bert_intermediate.1']
    #allocation5 [shape = 'u8[16384]{0}', space=vmem, size = 0x4000, scoped, tag = 'input window, operand 1, single buffered']
    #allocation6 [shape = 's32[1]{0}', space=sflag, size = 0x4, scoped, tag = 'scoped memory for bert_intermediate.1']
    #allocation7 [shape = 'u8[8192]{0}', space=vmem, size = 0x2000, scoped, tag = 'output window, operand 0, single buffered']
    %8 = vsyncpa [#allocation3], 0
    %9 = vsyncpa [#allocation6], 0
    %10 = vsyncpa [#allocation4], 0
    // Predicated region
    $region2: #{bert_intermediate.1} parent=1 // pred_check
      _
    $region3: #{bert_intermediate.1} parent=1 // pred_check_branch
      %12 = sbr.rel (0) target = $region5
    $region4: #{bert_intermediate.1} parent=1 // pred_region
      %s14 = ssub.s32 256, 256
      %15 = vsyncadd [#allocation3], %s14
      %s16 = sshll.u32 [#allocation2], 4
      %s17 = int_to_ptr.vmem [resolvable:$true] %s16
      %22 = dma.hbm_to_vmem [thread:$0]  %s0, 256, %s17, [#allocation3], 128, 128, 8
    $region5: #{bert_intermediate.1} parent=1 // pred_fallthru
      _
    // Predicated region
    $region6: #{bert_intermediate.1} parent=1 // pred_check
      _
    $region7: #{bert_intermediate.1} parent=1 // pred_check_branch
      %24 = sbr.rel (0) target = $region9
    $region8: #{bert_intermediate.1} parent=1 // pred_region
      %s26 = ssub.s32 512, 512
      %27 = vsyncadd [#allocation6], %s26
      %s28 = sshll.u32 [#allocation5], 4
      %s29 = int_to_ptr.vmem [resolvable:$true] %s28
      %34 = dma.hbm_to_vmem [thread:$0]  %s1, 512, %s29, [#allocation6], 128, 128, 8
    $region9: #{bert_intermediate.1} parent=1 // pred_fallthru
      _
    // Predicated region
    $region10: #{bert_intermediate.1} parent=1 // pred_check
      _
    $region11: #{bert_intermediate.1} parent=1 // pred_check_branch
      %36 = sbr.rel (0) target = $region13
    $region12: #{bert_intermediate.1} parent=1 // pred_region
      _
    $region13: #{bert_intermediate.1} parent=1 // pred_fallthru
      _
    // Predicated region
    $region14: #{bert_intermediate.1} parent=1 // pred_check
      _
    $region15: #{bert_intermediate.1} parent=1 // pred_check_branch
      %38 = sbr.rel (0) target = $region17
    $region16: #{bert_intermediate.1} parent=1 // pred_region
      %39 = dma.done [#allocation3], 256
    $region17: #{bert_intermediate.1} parent=1 // pred_fallthru
      _
    // Predicated region
    $region18: #{bert_intermediate.1} parent=1 // pred_check
      _
    $region19: #{bert_intermediate.1} parent=1 // pred_check_branch
      %41 = sbr.rel (0) target = $region21
    $region20: #{bert_intermediate.1} parent=1 // pred_region
      %42 = dma.done [#allocation6], 512
    $region21: #{bert_intermediate.1} parent=1 // pred_fallthru
      _
    %v43 = vld [vmem:[#allocation2] sm:$0xff]
    %v44 = vld [vmem:[#allocation2 + $0x8] sm:$0xff]
    %v45 = vld [vmem:[#allocation5] sm:$0xff]
    %v46 = vld [vmem:[#allocation5 + $0x8] sm:$0xff]
    %v47 = vld [vmem:[#allocation5 + $0x10] sm:$0xff]
    %v48 = vld [vmem:[#allocation5 + $0x18] sm:$0xff]
    %v49 = vld [vmem:[%s2] sm:$0x1]
    %v51 = vlaneseq
    %v52 = vshrl.u32 %v51, 7
    %v53 = vsub.s32 0, %v52
    %v54 = vrot.slane %v49, %v53
    %vm56 = vcmask 261120
    %v58 = vsel %vm56, %v43, 0
    %v61 = vsel %vm56, %v44, 0
    %63 = vmatprep.subr.mxu0 0.0
    %64 = vmatpush1.msra.mxu0 %v45
    %65 = vmatprep.subr.mxu0 0.0
    %66 = vmatpush1.msra.mxu0 %v46
    %67 = vmatprep.subr.mxu0 0.0
    %68 = vmatpush1.msra.mxu0 %v47
    %69 = vmatprep.subr.mxu0 0.0
    %70 = vmatpush1.msra.mxu0 %v48
    %71 = vmatprep.subr.mxu0 0.0
    %72 = vmatpush1.msra.mxu0 0.0
    %73 = vmatprep.subr.mxu0 0.0
    %74 = vmatpush1.msra.mxu0 0.0
    %75 = vmatprep.subr.mxu0 0.0
    %76 = vmatpush1.msra.mxu0 0.0
    %77 = vmatprep.subr.mxu0 0.0
    %78 = vmatpush1.msra.mxu0 0.0
    %79 = vmatprep.subr.mxu0 0.0
    %80 = vmatpush1.msra.mxu0 0.0
    %81 = vmatprep.subr.mxu0 0.0
    %82 = vmatpush1.msra.mxu0 0.0
    %83 = vmatprep.subr.mxu0 0.0
    %84 = vmatpush1.msra.mxu0 0.0
    %85 = vmatprep.subr.mxu0 0.0
    %86 = vmatpush1.msra.mxu0 0.0
    %87 = vmatprep.subr.mxu0 0.0
    %88 = vmatpush1.msra.mxu0 0.0
    %89 = vmatprep.subr.mxu0 0.0
    %90 = vmatpush1.msra.mxu0 0.0
    %91 = vmatprep.subr.mxu0 0.0
    %92 = vmatpush1.msra.mxu0 0.0
    %93 = vmatprep.subr.mxu0 0.0
    %94 = vmatpush1.msra.mxu0 0.0
    %95 = vmatprep.subr.mxu0 0.0
    %96 = vmatpush1.msra.mxu0 0.0
    %97 = vmatprep.subr.mxu0 0.0
    %98 = vmatpush1.msra.mxu0 0.0
    %99 = vmatprep.subr.mxu0 0.0
    %100 = vmatpush1.msra.mxu0 0.0
    %101 = vmatprep.subr.mxu0 0.0
    %102 = vmatpush1.msra.mxu0 0.0
    %103 = vmatprep.subr.mxu0 0.0
    %104 = vmatpush1.msra.mxu0 0.0
    %105 = vmatprep.subr.mxu0 0.0
    %106 = vmatpush1.msra.mxu0 0.0
    %107 = vmatprep.subr.mxu0 0.0
    %108 = vmatpush1.msra.mxu0 0.0
    %109 = vmatprep.subr.mxu0 0.0
    %110 = vmatpush1.msra.mxu0 0.0
    %111 = vmatprep.subr.mxu0 0.0
    %112 = vmatpush1.msra.mxu0 0.0
    %113 = vmatprep.subr.mxu0 0.0
    %114 = vmatpush1.msra.mxu0 0.0
    %115 = vmatprep.subr.mxu0 0.0
    %116 = vmatpush1.msra.mxu0 0.0
    %117 = vmatprep.subr.mxu0 0.0
    %118 = vmatpush1.msra.mxu0 0.0
    %119 = vmatprep.subr.mxu0 0.0
    %120 = vmatpush1.msra.mxu0 0.0
    %121 = vmatprep.subr.mxu0 0.0
    %122 = vmatpush1.msra.mxu0 0.0
    %123 = vmatprep.subr.mxu0 0.0
    %124 = vmatpush1.msra.mxu0 0.0
    %125 = vmatprep.subr.mxu0 0.0
    %126 = vmatpush1.msra.mxu0 0.0
    %127 = vmatprep.mubr.f32.mxu0 0.0
    %128 = vmatmul.mubr.f32.gmra.mrb[0].mxu0 %v58
    %v129 = vpop.f32.mrb[0].mxu0
    %v130 = vadd.f32 %v54, %v129
    %v131 = vpop.f32.mrb[0].mxu0
    %132 = vmatprep.mubr.f32.mxu0 0.0
    %133 = vmatmul.mubr.f32.gmra.mrb[0].mxu0 %v61
    %v134 = vpop.f32.mrb[0].mxu0
    %v135 = vadd.f32 %v54, %v134
    %v136 = vpop.f32.mrb[0].mxu0
    %137 = vdwg.mxu0
    %v138 = vmax.f32 %v130, -50000.0
    %v139 = vmax.f32 %v135, -50000.0
    %v140 = vmin.f32 %v138, 50000.0
    %v141 = vmin.f32 %v139, 50000.0
    %v142 = vmul.f32 %v140, 0.5
    %v143 = vmul.f32 %v141, 0.5
    %v144 = vmul.f32 %v140, 0.70710677
    %v145 = vmul.f32 %v141, 0.70710677
    %v146 = verf.f32.pop %v144
    %v147 = verf.f32.pop %v145
    %v148 = vadd.f32 %v146, 1.0
    %v149 = vadd.f32 %v147, 1.0
    %v150 = vmul.f32 %v142, %v148
    %v151 = vmul.f32 %v143, %v149
    %152 = vst [vmem:[#allocation7] sm:$0xff] %v150
    %153 = vst [vmem:[#allocation7 + $0x8] sm:$0xff] %v151
    // Predicated region
    $region22: #{bert_intermediate.1} parent=1 // pred_check
      _
    $region23: #{bert_intermediate.1} parent=1 // pred_check_branch
      %155 = sbr.rel (0) target = $region25
    $region24: #{bert_intermediate.1} parent=1 // pred_region
      %s157 = ssub.s32 256, 256
      %158 = vsyncadd [#allocation4], %s157
      %s159 = sshll.u32 [#allocation7], 4
      %s160 = int_to_ptr.vmem [resolvable:$true] %s159
      %165 = dma.vmem_to_hbm [thread:$0]  %s160, 256, %s3, [#allocation4], 128, 128, 8
    $region25: #{bert_intermediate.1} parent=1 // pred_fallthru
      _
    // Predicated region
    $region26: #{bert_intermediate.1} parent=1 // pred_check
      _
    $region27: #{bert_intermediate.1} parent=1 // pred_check_branch
      %167 = sbr.rel (0) target = $region29
    $region28: #{bert_intermediate.1} parent=1 // pred_region
      %168 = dma.done [#allocation4], 256
    $region29: #{bert_intermediate.1} parent=1 // pred_fallthru
      _
    %169 = vsyncpa [#allocation3], 1
    %170 = vsyncpa [#allocation6], 1
    %171 = vsyncpa [#allocation4], 1

</llo_original>
